<compile_context>
chip_gen: v7x
topology: tpu7x:2x2x1
jax: 0.10.0
libtpu: 0.0.40
codegen_flags: <defaults>
</compile_context>

<pallas_src>
import jax
import jax.numpy as jnp
from jax.experimental import pallas as pl
from jax.experimental.pallas import tpu as pltpu

LANES = 128  # batch maps onto the 128-lane axis

# offsets into the packed parameter vector (all f32)
_W1, _B1 = 0, 24      # w1: [3,8] row-major (k*8+o), b1: [8]
_W2, _B2 = 32, 96     # w2: [8,8] row-major (k*8+o), b2: [8]
_W3, _B3 = 104, 112   # w3: [8],                    b3: [1]
_PACKED_LEN = 128     # 113 real values, padded for tidiness


def terminal_mlp_kernel(p_ref, x_ref, o_ref):
    """Whole MLP forward on one lane-dense batch tile, entirely on the VPU.

    p_ref : [128]            packed weights/biases, SMEM (scalar reads)
    x_ref : [3, TR, 128]     batch tile, feature-major (VMEM)
    o_ref : [TR, 128]        output tile (VMEM, unmasked lane-dense stores)
    """
    x0 = x_ref[0]  # (TR, 128)
    x1 = x_ref[1]
    x2 = x_ref[2]

    # layer 1: 3 -> 8, ReLU  (broadcast-FMA: SMEM scalar * batch vreg)
    h1 = []
    for o in range(8):
        a = x0 * p_ref[_W1 + 0 * 8 + o]
        a = a + x1 * p_ref[_W1 + 1 * 8 + o]
        a = a + x2 * p_ref[_W1 + 2 * 8 + o]
        a = a + p_ref[_B1 + o]
        h1.append(jnp.maximum(a, 0.0))

    # layer 2: 8 -> 8, ReLU
    h2 = []
    for o in range(8):
        a = h1[0] * p_ref[_W2 + 0 * 8 + o]
        for k in range(1, 8):
            a = a + h1[k] * p_ref[_W2 + k * 8 + o]
        a = a + p_ref[_B2 + o]
        h2.append(jnp.maximum(a, 0.0))

    # layer 3: 8 -> 1
    out = h2[0] * p_ref[_W3 + 0]
    for k in range(1, 8):
        out = out + h2[k] * p_ref[_W3 + k]
    out = out + p_ref[_B3]

    o_ref[...] = out.astype(o_ref.dtype)


def pack_params(params):
    """Flatten all weights/biases into one f32[128] vector (SMEM-resident)."""
    flat = jnp.concatenate([
        params["w1"].reshape(-1),  # 24  (k*8 + o)
        params["b1"].reshape(-1),  # 8
        params["w2"].reshape(-1),  # 64  (k*8 + o)
        params["b2"].reshape(-1),  # 8
        params["w3"].reshape(-1),  # 8
        params["b3"].reshape(-1),  # 1
    ]).astype(jnp.float32)
    return jnp.pad(flat, (0, _PACKED_LEN - flat.shape[0]))


def _round_up(x, m):
    return ((x + m - 1) // m) * m


def reference_forward(state, p):
    """Pure-JAX reference (also the small-batch fallback path)."""
    h1 = jnp.maximum(state @ p["w1"] + p["b1"], 0.0)
    h2 = jnp.maximum(h1 @ p["w2"] + p["b2"], 0.0)
    return h2 @ p["w3"] + p["b3"]


def _pallas_forward(state, packed, *, tile_rows):
    B = state.shape[0]

    # batch -> (rows, 128 lanes); rows tiled along the grid
    R = (B + LANES - 1) // LANES
    tr = min(tile_rows, _round_up(R, 8))
    # give v7x's two TensorCores at least 2 grid steps when the batch allows it
    if _round_up(R, tr) // tr < 2 and R > 8:
        tr = _round_up((R + 1) // 2, 8)
    R_pad = _round_up(R, tr)
    B_pad = R_pad * LANES

    xT = jnp.transpose(state)  # (3, B): feature-major, batch on the fast axis
    if B_pad != B:
        xT = jnp.pad(xT, ((0, 0), (0, B_pad - B)))
    x3 = xT.reshape(3, R_pad, LANES)

    grid = (R_pad // tr,)

    out = pl.pallas_call(
        terminal_mlp_kernel,
        out_shape=jax.ShapeDtypeStruct((R_pad, LANES), jnp.float32),
        grid_spec=pltpu.PrefetchScalarGridSpec(
            num_scalar_prefetch=0,
            grid=grid,
            in_specs=[
                # packed weights: one small SMEM-resident vector (no VMEM pipelining)
                pl.BlockSpec(memory_space=pltpu.MemorySpace.SMEM),
                # lane-dense batch tile
                pl.BlockSpec((3, tr, LANES), lambda i: (0, i, 0)),
            ],
            out_specs=pl.BlockSpec((tr, LANES), lambda i: (i, 0)),
        ),
        compiler_params=pltpu.CompilerParams(
            dimension_semantics=("parallel",)
        ),
    )(packed, x3)

    return out.reshape(B_pad)[:B].reshape(B, 1)


def terminal_network_forward(state, params, *, tile_rows=512,
                             min_pallas_batch=1024, force_pallas=False):
    """TerminalNetwork forward.

    state : [B, 3] float32
    params: dict with w1[3,8], b1[1,8], w2[8,8], b2[1,8], w3[8,1], b3[1,1]
    returns [B, 1] float32
    """
    state = jnp.asarray(state, jnp.float32)
    B, F = state.shape
    assert F == 3
    assert tile_rows >= 8 and tile_rows % 8 == 0

    # pallas_call fixed overhead dwarfs the work for tiny batches
    if (not force_pallas) and B < min_pallas_batch:
        return reference_forward(state, params)

    return _pallas_forward(state, pack_params(params), tile_rows=tile_rows)


def init_params(key):
    """Deterministic init mimicking nn.Linear's uniform(-1/sqrt(fan_in), ...)."""
    ks = jax.random.split(key, 6)

    def linear(kw, kb, fan_in, fan_out):
        bound = 1.0 / jnp.sqrt(jnp.float32(fan_in))
        w = jax.random.uniform(kw, (fan_in, fan_out), jnp.float32, -bound, bound)
        b = jax.random.uniform(kb, (1, fan_out), jnp.float32, -bound, bound)
        return w, b

    w1, b1 = linear(ks[0], ks[1], 3, 8)
    w2, b2 = linear(ks[2], ks[3], 8, 8)
    w3, b3 = linear(ks[4], ks[5], 8, 1)
    return {"w1": w1, "b1": b1, "w2": w2, "b2": b2, "w3": w3, "b3": b3}


if __name__ == "__main__":
    key = jax.random.PRNGKey(0)
    k_params, k1, k2, k3 = jax.random.split(key, 4)
    params = init_params(k_params)

    # 1) Pallas path, multi-step grid (tile_rows=8 -> grid of 4 tiles), B=4096
    s1 = jax.random.normal(k1, (4096, 3), dtype=jnp.float32)
    o1 = jax.block_until_ready(terminal_network_forward(s1, params, tile_rows=8))
    r1 = reference_forward(s1, params)
    assert o1.shape == (4096, 1)
    assert jnp.allclose(o1, r1, atol=1e-5, rtol=1e-5), "mismatch vs reference (B=4096)"

    # 2) Pallas path with batch padding (B not a multiple of 128)
    s2 = jax.random.normal(k2, (1500, 3), dtype=jnp.float32)
    o2 = jax.block_until_ready(
        terminal_network_forward(s2, params, force_pallas=True))
    r2 = reference_forward(s2, params)
    assert o2.shape == (1500, 1)
    assert jnp.allclose(o2, r2, atol=1e-5, rtol=1e-5), "mismatch vs reference (B=1500)"

    # 3) tiny batch -> pure-JAX fallback (kernel overhead not worth ~200 FLOPs)
    s3 = jax.random.normal(k3, (8, 3), dtype=jnp.float32)
    o3 = jax.block_until_ready(terminal_network_forward(s3, params))
    assert o3.shape == (8, 1)
    assert jnp.allclose(o3, reference_forward(s3, params), atol=1e-5, rtol=1e-5), \
        "mismatch vs reference (B=8 fallback)"

    print("KERNEL_OK")
</pallas_src>

<mosaic_0001>
module attributes {stable_mosaic.version = 11 : i64} {
  func.func @terminal_mlp_kernel(%arg0: i32, %arg1: memref<128xf32, #tpu.memory_space<smem>>, %arg2: memref<3x8x128xf32, #tpu.memory_space<vmem>>, %arg3: memref<8x128xf32, #tpu.memory_space<vmem>>) attributes {dimension_semantics = [#tpu.dimension_semantics<parallel>], iteration_bounds = array<i64: 4>, scalar_prefetch = 0 : i64, scratch_operands = 0 : i64, tpu.core_type = #tpu.core_type<tc>, window_params = [{transform_indices = @transform_0, window_bounds = array<i64: 128>}, {transform_indices = @transform_1, window_bounds = array<i64: 3, 8, 128>}, {transform_indices = @transform_2, window_bounds = array<i64: 8, 128>}]} {
    %c0 = arith.constant 0 : index
    %c0_0 = arith.constant 0 : index
    %c0_1 = arith.constant 0 : index
    %0 = vector.load %arg2[%c0, %c0_0, %c0_1] : memref<3x8x128xf32, #tpu.memory_space<vmem>>, vector<1x8x128xf32>
    %1 = vector.shape_cast %0 : vector<1x8x128xf32> to vector<8x128xf32>
    %c1 = arith.constant 1 : index
    %c0_2 = arith.constant 0 : index
    %c0_3 = arith.constant 0 : index
    %2 = vector.load %arg2[%c1, %c0_2, %c0_3] : memref<3x8x128xf32, #tpu.memory_space<vmem>>, vector<1x8x128xf32>
    %3 = vector.shape_cast %2 : vector<1x8x128xf32> to vector<8x128xf32>
    %c2 = arith.constant 2 : index
    %c0_4 = arith.constant 0 : index
    %c0_5 = arith.constant 0 : index
    %4 = vector.load %arg2[%c2, %c0_4, %c0_5] : memref<3x8x128xf32, #tpu.memory_space<vmem>>, vector<1x8x128xf32>
    %5 = vector.shape_cast %4 : vector<1x8x128xf32> to vector<8x128xf32>
    %c0_6 = arith.constant 0 : index
    %6 = memref.load %arg1[%c0_6] : memref<128xf32, #tpu.memory_space<smem>>
    %7 = vector.broadcast %6 : f32 to vector<8x128xf32>
    %8 = arith.mulf %1, %7 : vector<8x128xf32>
    %c8 = arith.constant 8 : index
    %9 = memref.load %arg1[%c8] : memref<128xf32, #tpu.memory_space<smem>>
    %10 = vector.broadcast %9 : f32 to vector<8x128xf32>
    %11 = arith.mulf %3, %10 : vector<8x128xf32>
    %12 = arith.addf %8, %11 : vector<8x128xf32>
    %c16 = arith.constant 16 : index
    %13 = memref.load %arg1[%c16] : memref<128xf32, #tpu.memory_space<smem>>
    %14 = vector.broadcast %13 : f32 to vector<8x128xf32>
    %15 = arith.mulf %5, %14 : vector<8x128xf32>
    %16 = arith.addf %12, %15 : vector<8x128xf32>
    %c24 = arith.constant 24 : index
    %17 = memref.load %arg1[%c24] : memref<128xf32, #tpu.memory_space<smem>>
    %18 = vector.broadcast %17 : f32 to vector<8x128xf32>
    %19 = arith.addf %16, %18 : vector<8x128xf32>
    %cst = arith.constant 0.000000e+00 : f32
    %20 = vector.broadcast %cst : f32 to vector<8x128xf32>
    %21 = arith.maximumf %19, %20 : vector<8x128xf32>
    %c1_7 = arith.constant 1 : index
    %22 = memref.load %arg1[%c1_7] : memref<128xf32, #tpu.memory_space<smem>>
    %23 = vector.broadcast %22 : f32 to vector<8x128xf32>
    %24 = arith.mulf %1, %23 : vector<8x128xf32>
    %c9 = arith.constant 9 : index
    %25 = memref.load %arg1[%c9] : memref<128xf32, #tpu.memory_space<smem>>
    %26 = vector.broadcast %25 : f32 to vector<8x128xf32>
    %27 = arith.mulf %3, %26 : vector<8x128xf32>
    %28 = arith.addf %24, %27 : vector<8x128xf32>
    %c17 = arith.constant 17 : index
    %29 = memref.load %arg1[%c17] : memref<128xf32, #tpu.memory_space<smem>>
    %30 = vector.broadcast %29 : f32 to vector<8x128xf32>
    %31 = arith.mulf %5, %30 : vector<8x128xf32>
    %32 = arith.addf %28, %31 : vector<8x128xf32>
    %c25 = arith.constant 25 : index
    %33 = memref.load %arg1[%c25] : memref<128xf32, #tpu.memory_space<smem>>
    %34 = vector.broadcast %33 : f32 to vector<8x128xf32>
    %35 = arith.addf %32, %34 : vector<8x128xf32>
    %cst_8 = arith.constant 0.000000e+00 : f32
    %36 = vector.broadcast %cst_8 : f32 to vector<8x128xf32>
    %37 = arith.maximumf %35, %36 : vector<8x128xf32>
    %c2_9 = arith.constant 2 : index
    %38 = memref.load %arg1[%c2_9] : memref<128xf32, #tpu.memory_space<smem>>
    %39 = vector.broadcast %38 : f32 to vector<8x128xf32>
    %40 = arith.mulf %1, %39 : vector<8x128xf32>
    %c10 = arith.constant 10 : index
    %41 = memref.load %arg1[%c10] : memref<128xf32, #tpu.memory_space<smem>>
    %42 = vector.broadcast %41 : f32 to vector<8x128xf32>
    %43 = arith.mulf %3, %42 : vector<8x128xf32>
    %44 = arith.addf %40, %43 : vector<8x128xf32>
    %c18 = arith.constant 18 : index
    %45 = memref.load %arg1[%c18] : memref<128xf32, #tpu.memory_space<smem>>
    %46 = vector.broadcast %45 : f32 to vector<8x128xf32>
    %47 = arith.mulf %5, %46 : vector<8x128xf32>
    %48 = arith.addf %44, %47 : vector<8x128xf32>
    %c26 = arith.constant 26 : index
    %49 = memref.load %arg1[%c26] : memref<128xf32, #tpu.memory_space<smem>>
    %50 = vector.broadcast %49 : f32 to vector<8x128xf32>
    %51 = arith.addf %48, %50 : vector<8x128xf32>
    %cst_10 = arith.constant 0.000000e+00 : f32
    %52 = vector.broadcast %cst_10 : f32 to vector<8x128xf32>
    %53 = arith.maximumf %51, %52 : vector<8x128xf32>
    %c3 = arith.constant 3 : index
    %54 = memref.load %arg1[%c3] : memref<128xf32, #tpu.memory_space<smem>>
    %55 = vector.broadcast %54 : f32 to vector<8x128xf32>
    %56 = arith.mulf %1, %55 : vector<8x128xf32>
    %c11 = arith.constant 11 : index
    %57 = memref.load %arg1[%c11] : memref<128xf32, #tpu.memory_space<smem>>
    %58 = vector.broadcast %57 : f32 to vector<8x128xf32>
    %59 = arith.mulf %3, %58 : vector<8x128xf32>
    %60 = arith.addf %56, %59 : vector<8x128xf32>
    %c19 = arith.constant 19 : index
    %61 = memref.load %arg1[%c19] : memref<128xf32, #tpu.memory_space<smem>>
    %62 = vector.broadcast %61 : f32 to vector<8x128xf32>
    %63 = arith.mulf %5, %62 : vector<8x128xf32>
    %64 = arith.addf %60, %63 : vector<8x128xf32>
    %c27 = arith.constant 27 : index
    %65 = memref.load %arg1[%c27] : memref<128xf32, #tpu.memory_space<smem>>
    %66 = vector.broadcast %65 : f32 to vector<8x128xf32>
    %67 = arith.addf %64, %66 : vector<8x128xf32>
    %cst_11 = arith.constant 0.000000e+00 : f32
    %68 = vector.broadcast %cst_11 : f32 to vector<8x128xf32>
    %69 = arith.maximumf %67, %68 : vector<8x128xf32>
    %c4 = arith.constant 4 : index
    %70 = memref.load %arg1[%c4] : memref<128xf32, #tpu.memory_space<smem>>
    %71 = vector.broadcast %70 : f32 to vector<8x128xf32>
    %72 = arith.mulf %1, %71 : vector<8x128xf32>
    %c12 = arith.constant 12 : index
    %73 = memref.load %arg1[%c12] : memref<128xf32, #tpu.memory_space<smem>>
    %74 = vector.broadcast %73 : f32 to vector<8x128xf32>
    %75 = arith.mulf %3, %74 : vector<8x128xf32>
    %76 = arith.addf %72, %75 : vector<8x128xf32>
    %c20 = arith.constant 20 : index
    %77 = memref.load %arg1[%c20] : memref<128xf32, #tpu.memory_space<smem>>
    %78 = vector.broadcast %77 : f32 to vector<8x128xf32>
    %79 = arith.mulf %5, %78 : vector<8x128xf32>
    %80 = arith.addf %76, %79 : vector<8x128xf32>
    %c28 = arith.constant 28 : index
    %81 = memref.load %arg1[%c28] : memref<128xf32, #tpu.memory_space<smem>>
    %82 = vector.broadcast %81 : f32 to vector<8x128xf32>
    %83 = arith.addf %80, %82 : vector<8x128xf32>
    %cst_12 = arith.constant 0.000000e+00 : f32
    %84 = vector.broadcast %cst_12 : f32 to vector<8x128xf32>
    %85 = arith.maximumf %83, %84 : vector<8x128xf32>
    %c5 = arith.constant 5 : index
    %86 = memref.load %arg1[%c5] : memref<128xf32, #tpu.memory_space<smem>>
    %87 = vector.broadcast %86 : f32 to vector<8x128xf32>
    %88 = arith.mulf %1, %87 : vector<8x128xf32>
    %c13 = arith.constant 13 : index
    %89 = memref.load %arg1[%c13] : memref<128xf32, #tpu.memory_space<smem>>
    %90 = vector.broadcast %89 : f32 to vector<8x128xf32>
    %91 = arith.mulf %3, %90 : vector<8x128xf32>
    %92 = arith.addf %88, %91 : vector<8x128xf32>
    %c21 = arith.constant 21 : index
    %93 = memref.load %arg1[%c21] : memref<128xf32, #tpu.memory_space<smem>>
    %94 = vector.broadcast %93 : f32 to vector<8x128xf32>
    %95 = arith.mulf %5, %94 : vector<8x128xf32>
    %96 = arith.addf %92, %95 : vector<8x128xf32>
    %c29 = arith.constant 29 : index
    %97 = memref.load %arg1[%c29] : memref<128xf32, #tpu.memory_space<smem>>
    %98 = vector.broadcast %97 : f32 to vector<8x128xf32>
    %99 = arith.addf %96, %98 : vector<8x128xf32>
    %cst_13 = arith.constant 0.000000e+00 : f32
    %100 = vector.broadcast %cst_13 : f32 to vector<8x128xf32>
    %101 = arith.maximumf %99, %100 : vector<8x128xf32>
    %c6 = arith.constant 6 : index
    %102 = memref.load %arg1[%c6] : memref<128xf32, #tpu.memory_space<smem>>
    %103 = vector.broadcast %102 : f32 to vector<8x128xf32>
    %104 = arith.mulf %1, %103 : vector<8x128xf32>
    %c14 = arith.constant 14 : index
    %105 = memref.load %arg1[%c14] : memref<128xf32, #tpu.memory_space<smem>>
    %106 = vector.broadcast %105 : f32 to vector<8x128xf32>
    %107 = arith.mulf %3, %106 : vector<8x128xf32>
    %108 = arith.addf %104, %107 : vector<8x128xf32>
    %c22 = arith.constant 22 : index
    %109 = memref.load %arg1[%c22] : memref<128xf32, #tpu.memory_space<smem>>
    %110 = vector.broadcast %109 : f32 to vector<8x128xf32>
    %111 = arith.mulf %5, %110 : vector<8x128xf32>
    %112 = arith.addf %108, %111 : vector<8x128xf32>
    %c30 = arith.constant 30 : index
    %113 = memref.load %arg1[%c30] : memref<128xf32, #tpu.memory_space<smem>>
    %114 = vector.broadcast %113 : f32 to vector<8x128xf32>
    %115 = arith.addf %112, %114 : vector<8x128xf32>
    %cst_14 = arith.constant 0.000000e+00 : f32
    %116 = vector.broadcast %cst_14 : f32 to vector<8x128xf32>
    %117 = arith.maximumf %115, %116 : vector<8x128xf32>
    %c7 = arith.constant 7 : index
    %118 = memref.load %arg1[%c7] : memref<128xf32, #tpu.memory_space<smem>>
    %119 = vector.broadcast %118 : f32 to vector<8x128xf32>
    %120 = arith.mulf %1, %119 : vector<8x128xf32>
    %c15 = arith.constant 15 : index
    %121 = memref.load %arg1[%c15] : memref<128xf32, #tpu.memory_space<smem>>
    %122 = vector.broadcast %121 : f32 to vector<8x128xf32>
    %123 = arith.mulf %3, %122 : vector<8x128xf32>
    %124 = arith.addf %120, %123 : vector<8x128xf32>
    %c23 = arith.constant 23 : index
    %125 = memref.load %arg1[%c23] : memref<128xf32, #tpu.memory_space<smem>>
    %126 = vector.broadcast %125 : f32 to vector<8x128xf32>
    %127 = arith.mulf %5, %126 : vector<8x128xf32>
    %128 = arith.addf %124, %127 : vector<8x128xf32>
    %c31 = arith.constant 31 : index
    %129 = memref.load %arg1[%c31] : memref<128xf32, #tpu.memory_space<smem>>
    %130 = vector.broadcast %129 : f32 to vector<8x128xf32>
    %131 = arith.addf %128, %130 : vector<8x128xf32>
    %cst_15 = arith.constant 0.000000e+00 : f32
    %132 = vector.broadcast %cst_15 : f32 to vector<8x128xf32>
    %133 = arith.maximumf %131, %132 : vector<8x128xf32>
    %c32 = arith.constant 32 : index
    %134 = memref.load %arg1[%c32] : memref<128xf32, #tpu.memory_space<smem>>
    %135 = vector.broadcast %134 : f32 to vector<8x128xf32>
    %136 = arith.mulf %21, %135 : vector<8x128xf32>
    %c40 = arith.constant 40 : index
    %137 = memref.load %arg1[%c40] : memref<128xf32, #tpu.memory_space<smem>>
    %138 = vector.broadcast %137 : f32 to vector<8x128xf32>
    %139 = arith.mulf %37, %138 : vector<8x128xf32>
    %140 = arith.addf %136, %139 : vector<8x128xf32>
    %c48 = arith.constant 48 : index
    %141 = memref.load %arg1[%c48] : memref<128xf32, #tpu.memory_space<smem>>
    %142 = vector.broadcast %141 : f32 to vector<8x128xf32>
    %143 = arith.mulf %53, %142 : vector<8x128xf32>
    %144 = arith.addf %140, %143 : vector<8x128xf32>
    %c56 = arith.constant 56 : index
    %145 = memref.load %arg1[%c56] : memref<128xf32, #tpu.memory_space<smem>>
    %146 = vector.broadcast %145 : f32 to vector<8x128xf32>
    %147 = arith.mulf %69, %146 : vector<8x128xf32>
    %148 = arith.addf %144, %147 : vector<8x128xf32>
    %c64 = arith.constant 64 : index
    %149 = memref.load %arg1[%c64] : memref<128xf32, #tpu.memory_space<smem>>
    %150 = vector.broadcast %149 : f32 to vector<8x128xf32>
    %151 = arith.mulf %85, %150 : vector<8x128xf32>
    %152 = arith.addf %148, %151 : vector<8x128xf32>
    %c72 = arith.constant 72 : index
    %153 = memref.load %arg1[%c72] : memref<128xf32, #tpu.memory_space<smem>>
    %154 = vector.broadcast %153 : f32 to vector<8x128xf32>
    %155 = arith.mulf %101, %154 : vector<8x128xf32>
    %156 = arith.addf %152, %155 : vector<8x128xf32>
    %c80 = arith.constant 80 : index
    %157 = memref.load %arg1[%c80] : memref<128xf32, #tpu.memory_space<smem>>
    %158 = vector.broadcast %157 : f32 to vector<8x128xf32>
    %159 = arith.mulf %117, %158 : vector<8x128xf32>
    %160 = arith.addf %156, %159 : vector<8x128xf32>
    %c88 = arith.constant 88 : index
    %161 = memref.load %arg1[%c88] : memref<128xf32, #tpu.memory_space<smem>>
    %162 = vector.broadcast %161 : f32 to vector<8x128xf32>
    %163 = arith.mulf %133, %162 : vector<8x128xf32>
    %164 = arith.addf %160, %163 : vector<8x128xf32>
    %c96 = arith.constant 96 : index
    %165 = memref.load %arg1[%c96] : memref<128xf32, #tpu.memory_space<smem>>
    %166 = vector.broadcast %165 : f32 to vector<8x128xf32>
    %167 = arith.addf %164, %166 : vector<8x128xf32>
    %cst_16 = arith.constant 0.000000e+00 : f32
    %168 = vector.broadcast %cst_16 : f32 to vector<8x128xf32>
    %169 = arith.maximumf %167, %168 : vector<8x128xf32>
    %c33 = arith.constant 33 : index
    %170 = memref.load %arg1[%c33] : memref<128xf32, #tpu.memory_space<smem>>
    %171 = vector.broadcast %170 : f32 to vector<8x128xf32>
    %172 = arith.mulf %21, %171 : vector<8x128xf32>
    %c41 = arith.constant 41 : index
    %173 = memref.load %arg1[%c41] : memref<128xf32, #tpu.memory_space<smem>>
    %174 = vector.broadcast %173 : f32 to vector<8x128xf32>
    %175 = arith.mulf %37, %174 : vector<8x128xf32>
    %176 = arith.addf %172, %175 : vector<8x128xf32>
    %c49 = arith.constant 49 : index
    %177 = memref.load %arg1[%c49] : memref<128xf32, #tpu.memory_space<smem>>
    %178 = vector.broadcast %177 : f32 to vector<8x128xf32>
    %179 = arith.mulf %53, %178 : vector<8x128xf32>
    %180 = arith.addf %176, %179 : vector<8x128xf32>
    %c57 = arith.constant 57 : index
    %181 = memref.load %arg1[%c57] : memref<128xf32, #tpu.memory_space<smem>>
    %182 = vector.broadcast %181 : f32 to vector<8x128xf32>
    %183 = arith.mulf %69, %182 : vector<8x128xf32>
    %184 = arith.addf %180, %183 : vector<8x128xf32>
    %c65 = arith.constant 65 : index
    %185 = memref.load %arg1[%c65] : memref<128xf32, #tpu.memory_space<smem>>
    %186 = vector.broadcast %185 : f32 to vector<8x128xf32>
    %187 = arith.mulf %85, %186 : vector<8x128xf32>
    %188 = arith.addf %184, %187 : vector<8x128xf32>
    %c73 = arith.constant 73 : index
    %189 = memref.load %arg1[%c73] : memref<128xf32, #tpu.memory_space<smem>>
    %190 = vector.broadcast %189 : f32 to vector<8x128xf32>
    %191 = arith.mulf %101, %190 : vector<8x128xf32>
    %192 = arith.addf %188, %191 : vector<8x128xf32>
    %c81 = arith.constant 81 : index
    %193 = memref.load %arg1[%c81] : memref<128xf32, #tpu.memory_space<smem>>
    %194 = vector.broadcast %193 : f32 to vector<8x128xf32>
    %195 = arith.mulf %117, %194 : vector<8x128xf32>
    %196 = arith.addf %192, %195 : vector<8x128xf32>
    %c89 = arith.constant 89 : index
    %197 = memref.load %arg1[%c89] : memref<128xf32, #tpu.memory_space<smem>>
    %198 = vector.broadcast %197 : f32 to vector<8x128xf32>
    %199 = arith.mulf %133, %198 : vector<8x128xf32>
    %200 = arith.addf %196, %199 : vector<8x128xf32>
    %c97 = arith.constant 97 : index
    %201 = memref.load %arg1[%c97] : memref<128xf32, #tpu.memory_space<smem>>
    %202 = vector.broadcast %201 : f32 to vector<8x128xf32>
    %203 = arith.addf %200, %202 : vector<8x128xf32>
    %cst_17 = arith.constant 0.000000e+00 : f32
    %204 = vector.broadcast %cst_17 : f32 to vector<8x128xf32>
    %205 = arith.maximumf %203, %204 : vector<8x128xf32>
    %c34 = arith.constant 34 : index
    %206 = memref.load %arg1[%c34] : memref<128xf32, #tpu.memory_space<smem>>
    %207 = vector.broadcast %206 : f32 to vector<8x128xf32>
    %208 = arith.mulf %21, %207 : vector<8x128xf32>
    %c42 = arith.constant 42 : index
    %209 = memref.load %arg1[%c42] : memref<128xf32, #tpu.memory_space<smem>>
    %210 = vector.broadcast %209 : f32 to vector<8x128xf32>
    %211 = arith.mulf %37, %210 : vector<8x128xf32>
    %212 = arith.addf %208, %211 : vector<8x128xf32>
    %c50 = arith.constant 50 : index
    %213 = memref.load %arg1[%c50] : memref<128xf32, #tpu.memory_space<smem>>
    %214 = vector.broadcast %213 : f32 to vector<8x128xf32>
    %215 = arith.mulf %53, %214 : vector<8x128xf32>
    %216 = arith.addf %212, %215 : vector<8x128xf32>
    %c58 = arith.constant 58 : index
    %217 = memref.load %arg1[%c58] : memref<128xf32, #tpu.memory_space<smem>>
    %218 = vector.broadcast %217 : f32 to vector<8x128xf32>
    %219 = arith.mulf %69, %218 : vector<8x128xf32>
    %220 = arith.addf %216, %219 : vector<8x128xf32>
    %c66 = arith.constant 66 : index
    %221 = memref.load %arg1[%c66] : memref<128xf32, #tpu.memory_space<smem>>
    %222 = vector.broadcast %221 : f32 to vector<8x128xf32>
    %223 = arith.mulf %85, %222 : vector<8x128xf32>
    %224 = arith.addf %220, %223 : vector<8x128xf32>
    %c74 = arith.constant 74 : index
    %225 = memref.load %arg1[%c74] : memref<128xf32, #tpu.memory_space<smem>>
    %226 = vector.broadcast %225 : f32 to vector<8x128xf32>
    %227 = arith.mulf %101, %226 : vector<8x128xf32>
    %228 = arith.addf %224, %227 : vector<8x128xf32>
    %c82 = arith.constant 82 : index
    %229 = memref.load %arg1[%c82] : memref<128xf32, #tpu.memory_space<smem>>
    %230 = vector.broadcast %229 : f32 to vector<8x128xf32>
    %231 = arith.mulf %117, %230 : vector<8x128xf32>
    %232 = arith.addf %228, %231 : vector<8x128xf32>
    %c90 = arith.constant 90 : index
    %233 = memref.load %arg1[%c90] : memref<128xf32, #tpu.memory_space<smem>>
    %234 = vector.broadcast %233 : f32 to vector<8x128xf32>
    %235 = arith.mulf %133, %234 : vector<8x128xf32>
    %236 = arith.addf %232, %235 : vector<8x128xf32>
    %c98 = arith.constant 98 : index
    %237 = memref.load %arg1[%c98] : memref<128xf32, #tpu.memory_space<smem>>
    %238 = vector.broadcast %237 : f32 to vector<8x128xf32>
    %239 = arith.addf %236, %238 : vector<8x128xf32>
    %cst_18 = arith.constant 0.000000e+00 : f32
    %240 = vector.broadcast %cst_18 : f32 to vector<8x128xf32>
    %241 = arith.maximumf %239, %240 : vector<8x128xf32>
    %c35 = arith.constant 35 : index
    %242 = memref.load %arg1[%c35] : memref<128xf32, #tpu.memory_space<smem>>
    %243 = vector.broadcast %242 : f32 to vector<8x128xf32>
    %244 = arith.mulf %21, %243 : vector<8x128xf32>
    %c43 = arith.constant 43 : index
    %245 = memref.load %arg1[%c43] : memref<128xf32, #tpu.memory_space<smem>>
    %246 = vector.broadcast %245 : f32 to vector<8x128xf32>
    %247 = arith.mulf %37, %246 : vector<8x128xf32>
    %248 = arith.addf %244, %247 : vector<8x128xf32>
    %c51 = arith.constant 51 : index
    %249 = memref.load %arg1[%c51] : memref<128xf32, #tpu.memory_space<smem>>
    %250 = vector.broadcast %249 : f32 to vector<8x128xf32>
    %251 = arith.mulf %53, %250 : vector<8x128xf32>
    %252 = arith.addf %248, %251 : vector<8x128xf32>
    %c59 = arith.constant 59 : index
    %253 = memref.load %arg1[%c59] : memref<128xf32, #tpu.memory_space<smem>>
    %254 = vector.broadcast %253 : f32 to vector<8x128xf32>
    %255 = arith.mulf %69, %254 : vector<8x128xf32>
    %256 = arith.addf %252, %255 : vector<8x128xf32>
    %c67 = arith.constant 67 : index
    %257 = memref.load %arg1[%c67] : memref<128xf32, #tpu.memory_space<smem>>
    %258 = vector.broadcast %257 : f32 to vector<8x128xf32>
    %259 = arith.mulf %85, %258 : vector<8x128xf32>
    %260 = arith.addf %256, %259 : vector<8x128xf32>
    %c75 = arith.constant 75 : index
    %261 = memref.load %arg1[%c75] : memref<128xf32, #tpu.memory_space<smem>>
    %262 = vector.broadcast %261 : f32 to vector<8x128xf32>
    %263 = arith.mulf %101, %262 : vector<8x128xf32>
    %264 = arith.addf %260, %263 : vector<8x128xf32>
    %c83 = arith.constant 83 : index
    %265 = memref.load %arg1[%c83] : memref<128xf32, #tpu.memory_space<smem>>
    %266 = vector.broadcast %265 : f32 to vector<8x128xf32>
    %267 = arith.mulf %117, %266 : vector<8x128xf32>
    %268 = arith.addf %264, %267 : vector<8x128xf32>
    %c91 = arith.constant 91 : index
    %269 = memref.load %arg1[%c91] : memref<128xf32, #tpu.memory_space<smem>>
    %270 = vector.broadcast %269 : f32 to vector<8x128xf32>
    %271 = arith.mulf %133, %270 : vector<8x128xf32>
    %272 = arith.addf %268, %271 : vector<8x128xf32>
    %c99 = arith.constant 99 : index
    %273 = memref.load %arg1[%c99] : memref<128xf32, #tpu.memory_space<smem>>
    %274 = vector.broadcast %273 : f32 to vector<8x128xf32>
    %275 = arith.addf %272, %274 : vector<8x128xf32>
    %cst_19 = arith.constant 0.000000e+00 : f32
    %276 = vector.broadcast %cst_19 : f32 to vector<8x128xf32>
    %277 = arith.maximumf %275, %276 : vector<8x128xf32>
    %c36 = arith.constant 36 : index
    %278 = memref.load %arg1[%c36] : memref<128xf32, #tpu.memory_space<smem>>
    %279 = vector.broadcast %278 : f32 to vector<8x128xf32>
    %280 = arith.mulf %21, %279 : vector<8x128xf32>
    %c44 = arith.constant 44 : index
    %281 = memref.load %arg1[%c44] : memref<128xf32, #tpu.memory_space<smem>>
    %282 = vector.broadcast %281 : f32 to vector<8x128xf32>
    %283 = arith.mulf %37, %282 : vector<8x128xf32>
    %284 = arith.addf %280, %283 : vector<8x128xf32>
    %c52 = arith.constant 52 : index
    %285 = memref.load %arg1[%c52] : memref<128xf32, #tpu.memory_space<smem>>
    %286 = vector.broadcast %285 : f32 to vector<8x128xf32>
    %287 = arith.mulf %53, %286 : vector<8x128xf32>
    %288 = arith.addf %284, %287 : vector<8x128xf32>
    %c60 = arith.constant 60 : index
    %289 = memref.load %arg1[%c60] : memref<128xf32, #tpu.memory_space<smem>>
    %290 = vector.broadcast %289 : f32 to vector<8x128xf32>
    %291 = arith.mulf %69, %290 : vector<8x128xf32>
    %292 = arith.addf %288, %291 : vector<8x128xf32>
    %c68 = arith.constant 68 : index
    %293 = memref.load %arg1[%c68] : memref<128xf32, #tpu.memory_space<smem>>
    %294 = vector.broadcast %293 : f32 to vector<8x128xf32>
    %295 = arith.mulf %85, %294 : vector<8x128xf32>
    %296 = arith.addf %292, %295 : vector<8x128xf32>
    %c76 = arith.constant 76 : index
    %297 = memref.load %arg1[%c76] : memref<128xf32, #tpu.memory_space<smem>>
    %298 = vector.broadcast %297 : f32 to vector<8x128xf32>
    %299 = arith.mulf %101, %298 : vector<8x128xf32>
    %300 = arith.addf %296, %299 : vector<8x128xf32>
    %c84 = arith.constant 84 : index
    %301 = memref.load %arg1[%c84] : memref<128xf32, #tpu.memory_space<smem>>
    %302 = vector.broadcast %301 : f32 to vector<8x128xf32>
    %303 = arith.mulf %117, %302 : vector<8x128xf32>
    %304 = arith.addf %300, %303 : vector<8x128xf32>
    %c92 = arith.constant 92 : index
    %305 = memref.load %arg1[%c92] : memref<128xf32, #tpu.memory_space<smem>>
    %306 = vector.broadcast %305 : f32 to vector<8x128xf32>
    %307 = arith.mulf %133, %306 : vector<8x128xf32>
    %308 = arith.addf %304, %307 : vector<8x128xf32>
    %c100 = arith.constant 100 : index
    %309 = memref.load %arg1[%c100] : memref<128xf32, #tpu.memory_space<smem>>
    %310 = vector.broadcast %309 : f32 to vector<8x128xf32>
    %311 = arith.addf %308, %310 : vector<8x128xf32>
    %cst_20 = arith.constant 0.000000e+00 : f32
    %312 = vector.broadcast %cst_20 : f32 to vector<8x128xf32>
    %313 = arith.maximumf %311, %312 : vector<8x128xf32>
    %c37 = arith.constant 37 : index
    %314 = memref.load %arg1[%c37] : memref<128xf32, #tpu.memory_space<smem>>
    %315 = vector.broadcast %314 : f32 to vector<8x128xf32>
    %316 = arith.mulf %21, %315 : vector<8x128xf32>
    %c45 = arith.constant 45 : index
    %317 = memref.load %arg1[%c45] : memref<128xf32, #tpu.memory_space<smem>>
    %318 = vector.broadcast %317 : f32 to vector<8x128xf32>
    %319 = arith.mulf %37, %318 : vector<8x128xf32>
    %320 = arith.addf %316, %319 : vector<8x128xf32>
    %c53 = arith.constant 53 : index
    %321 = memref.load %arg1[%c53] : memref<128xf32, #tpu.memory_space<smem>>
    %322 = vector.broadcast %321 : f32 to vector<8x128xf32>
    %323 = arith.mulf %53, %322 : vector<8x128xf32>
    %324 = arith.addf %320, %323 : vector<8x128xf32>
    %c61 = arith.constant 61 : index
    %325 = memref.load %arg1[%c61] : memref<128xf32, #tpu.memory_space<smem>>
    %326 = vector.broadcast %325 : f32 to vector<8x128xf32>
    %327 = arith.mulf %69, %326 : vector<8x128xf32>
    %328 = arith.addf %324, %327 : vector<8x128xf32>
    %c69 = arith.constant 69 : index
    %329 = memref.load %arg1[%c69] : memref<128xf32, #tpu.memory_space<smem>>
    %330 = vector.broadcast %329 : f32 to vector<8x128xf32>
    %331 = arith.mulf %85, %330 : vector<8x128xf32>
    %332 = arith.addf %328, %331 : vector<8x128xf32>
    %c77 = arith.constant 77 : index
    %333 = memref.load %arg1[%c77] : memref<128xf32, #tpu.memory_space<smem>>
    %334 = vector.broadcast %333 : f32 to vector<8x128xf32>
    %335 = arith.mulf %101, %334 : vector<8x128xf32>
    %336 = arith.addf %332, %335 : vector<8x128xf32>
    %c85 = arith.constant 85 : index
    %337 = memref.load %arg1[%c85] : memref<128xf32, #tpu.memory_space<smem>>
    %338 = vector.broadcast %337 : f32 to vector<8x128xf32>
    %339 = arith.mulf %117, %338 : vector<8x128xf32>
    %340 = arith.addf %336, %339 : vector<8x128xf32>
    %c93 = arith.constant 93 : index
    %341 = memref.load %arg1[%c93] : memref<128xf32, #tpu.memory_space<smem>>
    %342 = vector.broadcast %341 : f32 to vector<8x128xf32>
    %343 = arith.mulf %133, %342 : vector<8x128xf32>
    %344 = arith.addf %340, %343 : vector<8x128xf32>
    %c101 = arith.constant 101 : index
    %345 = memref.load %arg1[%c101] : memref<128xf32, #tpu.memory_space<smem>>
    %346 = vector.broadcast %345 : f32 to vector<8x128xf32>
    %347 = arith.addf %344, %346 : vector<8x128xf32>
    %cst_21 = arith.constant 0.000000e+00 : f32
    %348 = vector.broadcast %cst_21 : f32 to vector<8x128xf32>
    %349 = arith.maximumf %347, %348 : vector<8x128xf32>
    %c38 = arith.constant 38 : index
    %350 = memref.load %arg1[%c38] : memref<128xf32, #tpu.memory_space<smem>>
    %351 = vector.broadcast %350 : f32 to vector<8x128xf32>
    %352 = arith.mulf %21, %351 : vector<8x128xf32>
    %c46 = arith.constant 46 : index
    %353 = memref.load %arg1[%c46] : memref<128xf32, #tpu.memory_space<smem>>
    %354 = vector.broadcast %353 : f32 to vector<8x128xf32>
    %355 = arith.mulf %37, %354 : vector<8x128xf32>
    %356 = arith.addf %352, %355 : vector<8x128xf32>
    %c54 = arith.constant 54 : index
    %357 = memref.load %arg1[%c54] : memref<128xf32, #tpu.memory_space<smem>>
    %358 = vector.broadcast %357 : f32 to vector<8x128xf32>
    %359 = arith.mulf %53, %358 : vector<8x128xf32>
    %360 = arith.addf %356, %359 : vector<8x128xf32>
    %c62 = arith.constant 62 : index
    %361 = memref.load %arg1[%c62] : memref<128xf32, #tpu.memory_space<smem>>
    %362 = vector.broadcast %361 : f32 to vector<8x128xf32>
    %363 = arith.mulf %69, %362 : vector<8x128xf32>
    %364 = arith.addf %360, %363 : vector<8x128xf32>
    %c70 = arith.constant 70 : index
    %365 = memref.load %arg1[%c70] : memref<128xf32, #tpu.memory_space<smem>>
    %366 = vector.broadcast %365 : f32 to vector<8x128xf32>
    %367 = arith.mulf %85, %366 : vector<8x128xf32>
    %368 = arith.addf %364, %367 : vector<8x128xf32>
    %c78 = arith.constant 78 : index
    %369 = memref.load %arg1[%c78] : memref<128xf32, #tpu.memory_space<smem>>
    %370 = vector.broadcast %369 : f32 to vector<8x128xf32>
    %371 = arith.mulf %101, %370 : vector<8x128xf32>
    %372 = arith.addf %368, %371 : vector<8x128xf32>
    %c86 = arith.constant 86 : index
    %373 = memref.load %arg1[%c86] : memref<128xf32, #tpu.memory_space<smem>>
    %374 = vector.broadcast %373 : f32 to vector<8x128xf32>
    %375 = arith.mulf %117, %374 : vector<8x128xf32>
    %376 = arith.addf %372, %375 : vector<8x128xf32>
    %c94 = arith.constant 94 : index
    %377 = memref.load %arg1[%c94] : memref<128xf32, #tpu.memory_space<smem>>
    %378 = vector.broadcast %377 : f32 to vector<8x128xf32>
    %379 = arith.mulf %133, %378 : vector<8x128xf32>
    %380 = arith.addf %376, %379 : vector<8x128xf32>
    %c102 = arith.constant 102 : index
    %381 = memref.load %arg1[%c102] : memref<128xf32, #tpu.memory_space<smem>>
    %382 = vector.broadcast %381 : f32 to vector<8x128xf32>
    %383 = arith.addf %380, %382 : vector<8x128xf32>
    %cst_22 = arith.constant 0.000000e+00 : f32
    %384 = vector.broadcast %cst_22 : f32 to vector<8x128xf32>
    %385 = arith.maximumf %383, %384 : vector<8x128xf32>
    %c39 = arith.constant 39 : index
    %386 = memref.load %arg1[%c39] : memref<128xf32, #tpu.memory_space<smem>>
    %387 = vector.broadcast %386 : f32 to vector<8x128xf32>
    %388 = arith.mulf %21, %387 : vector<8x128xf32>
    %c47 = arith.constant 47 : index
    %389 = memref.load %arg1[%c47] : memref<128xf32, #tpu.memory_space<smem>>
    %390 = vector.broadcast %389 : f32 to vector<8x128xf32>
    %391 = arith.mulf %37, %390 : vector<8x128xf32>
    %392 = arith.addf %388, %391 : vector<8x128xf32>
    %c55 = arith.constant 55 : index
    %393 = memref.load %arg1[%c55] : memref<128xf32, #tpu.memory_space<smem>>
    %394 = vector.broadcast %393 : f32 to vector<8x128xf32>
    %395 = arith.mulf %53, %394 : vector<8x128xf32>
    %396 = arith.addf %392, %395 : vector<8x128xf32>
    %c63 = arith.constant 63 : index
    %397 = memref.load %arg1[%c63] : memref<128xf32, #tpu.memory_space<smem>>
    %398 = vector.broadcast %397 : f32 to vector<8x128xf32>
    %399 = arith.mulf %69, %398 : vector<8x128xf32>
    %400 = arith.addf %396, %399 : vector<8x128xf32>
    %c71 = arith.constant 71 : index
    %401 = memref.load %arg1[%c71] : memref<128xf32, #tpu.memory_space<smem>>
    %402 = vector.broadcast %401 : f32 to vector<8x128xf32>
    %403 = arith.mulf %85, %402 : vector<8x128xf32>
    %404 = arith.addf %400, %403 : vector<8x128xf32>
    %c79 = arith.constant 79 : index
    %405 = memref.load %arg1[%c79] : memref<128xf32, #tpu.memory_space<smem>>
    %406 = vector.broadcast %405 : f32 to vector<8x128xf32>
    %407 = arith.mulf %101, %406 : vector<8x128xf32>
    %408 = arith.addf %404, %407 : vector<8x128xf32>
    %c87 = arith.constant 87 : index
    %409 = memref.load %arg1[%c87] : memref<128xf32, #tpu.memory_space<smem>>
    %410 = vector.broadcast %409 : f32 to vector<8x128xf32>
    %411 = arith.mulf %117, %410 : vector<8x128xf32>
    %412 = arith.addf %408, %411 : vector<8x128xf32>
    %c95 = arith.constant 95 : index
    %413 = memref.load %arg1[%c95] : memref<128xf32, #tpu.memory_space<smem>>
    %414 = vector.broadcast %413 : f32 to vector<8x128xf32>
    %415 = arith.mulf %133, %414 : vector<8x128xf32>
    %416 = arith.addf %412, %415 : vector<8x128xf32>
    %c103 = arith.constant 103 : index
    %417 = memref.load %arg1[%c103] : memref<128xf32, #tpu.memory_space<smem>>
    %418 = vector.broadcast %417 : f32 to vector<8x128xf32>
    %419 = arith.addf %416, %418 : vector<8x128xf32>
    %cst_23 = arith.constant 0.000000e+00 : f32
    %420 = vector.broadcast %cst_23 : f32 to vector<8x128xf32>
    %421 = arith.maximumf %419, %420 : vector<8x128xf32>
    %c104 = arith.constant 104 : index
    %422 = memref.load %arg1[%c104] : memref<128xf32, #tpu.memory_space<smem>>
    %423 = vector.broadcast %422 : f32 to vector<8x128xf32>
    %424 = arith.mulf %169, %423 : vector<8x128xf32>
    %c105 = arith.constant 105 : index
    %425 = memref.load %arg1[%c105] : memref<128xf32, #tpu.memory_space<smem>>
    %426 = vector.broadcast %425 : f32 to vector<8x128xf32>
    %427 = arith.mulf %205, %426 : vector<8x128xf32>
    %428 = arith.addf %424, %427 : vector<8x128xf32>
    %c106 = arith.constant 106 : index
    %429 = memref.load %arg1[%c106] : memref<128xf32, #tpu.memory_space<smem>>
    %430 = vector.broadcast %429 : f32 to vector<8x128xf32>
    %431 = arith.mulf %241, %430 : vector<8x128xf32>
    %432 = arith.addf %428, %431 : vector<8x128xf32>
    %c107 = arith.constant 107 : index
    %433 = memref.load %arg1[%c107] : memref<128xf32, #tpu.memory_space<smem>>
    %434 = vector.broadcast %433 : f32 to vector<8x128xf32>
    %435 = arith.mulf %277, %434 : vector<8x128xf32>
    %436 = arith.addf %432, %435 : vector<8x128xf32>
    %c108 = arith.constant 108 : index
    %437 = memref.load %arg1[%c108] : memref<128xf32, #tpu.memory_space<smem>>
    %438 = vector.broadcast %437 : f32 to vector<8x128xf32>
    %439 = arith.mulf %313, %438 : vector<8x128xf32>
    %440 = arith.addf %436, %439 : vector<8x128xf32>
    %c109 = arith.constant 109 : index
    %441 = memref.load %arg1[%c109] : memref<128xf32, #tpu.memory_space<smem>>
    %442 = vector.broadcast %441 : f32 to vector<8x128xf32>
    %443 = arith.mulf %349, %442 : vector<8x128xf32>
    %444 = arith.addf %440, %443 : vector<8x128xf32>
    %c110 = arith.constant 110 : index
    %445 = memref.load %arg1[%c110] : memref<128xf32, #tpu.memory_space<smem>>
    %446 = vector.broadcast %445 : f32 to vector<8x128xf32>
    %447 = arith.mulf %385, %446 : vector<8x128xf32>
    %448 = arith.addf %444, %447 : vector<8x128xf32>
    %c111 = arith.constant 111 : index
    %449 = memref.load %arg1[%c111] : memref<128xf32, #tpu.memory_space<smem>>
    %450 = vector.broadcast %449 : f32 to vector<8x128xf32>
    %451 = arith.mulf %421, %450 : vector<8x128xf32>
    %452 = arith.addf %448, %451 : vector<8x128xf32>
    %c112 = arith.constant 112 : index
    %453 = memref.load %arg1[%c112] : memref<128xf32, #tpu.memory_space<smem>>
    %454 = vector.broadcast %453 : f32 to vector<8x128xf32>
    %455 = arith.addf %452, %454 : vector<8x128xf32>
    %c0_24 = arith.constant 0 : index
    %c0_25 = arith.constant 0 : index
    %456 = vector.load %arg3[%c0_24, %c0_25] : memref<8x128xf32, #tpu.memory_space<vmem>>, vector<8x128xf32>
    tpu.vector_store %arg3[%c0_24, %c0_25], %455 {strides = array<i32>} : memref<8x128xf32, #tpu.memory_space<vmem>>, vector<8x128xf32>,
    return
  }
  func.func @transform_0(%arg0: i32) -> i32 {
    %c0_i32 = arith.constant 0 : i32
    %c0_i32_0 = arith.constant 0 : i32
    return %c0_i32 : i32
  }
  func.func @transform_1(%arg0: i32) -> (i32, i32, i32) {
    %c0_i32 = arith.constant 0 : i32
    %c0_i32_0 = arith.constant 0 : i32
    %c0_i32_1 = arith.constant 0 : i32
    return %c0_i32, %arg0, %c0_i32_0 : i32, i32, i32
  }
  func.func @transform_2(%arg0: i32) -> (i32, i32) {
    %c0_i32 = arith.constant 0 : i32
    %c0_i32_0 = arith.constant 0 : i32
    return %arg0, %c0_i32 : i32, i32
  }
}

</mosaic_0001>

<llo_original>
// kernel: tpu_custom_call.1
$region0: #{tpu_custom_call.1}
  #allocation0 [shape = 'u32[]', space=smem, size = 0x4, offset = 0x4, fixed_abs, tag = 'smem constant byte address 0x4 - core index']
  #allocation1 [shape = 'u32[144,128]{1,0:T(1,128)}', space=vmem, size = 0x12000, scoped, tag = 'internal scratch']
  %s0 = inlined_call_operand.hbm [shape: f32[128], index: 0, kind: input, shape index: {}]
  %s1 = inlined_call_operand.hbm [shape: f32[3,32,128], index: 1, kind: input, shape index: {}]
  %s2 = inlined_call_operand.hbm [shape: f32[32,128], index: 2, kind: output, shape index: {}]
  %s3 = sld [smem:[#allocation0]]
  $region49: #{tpu_custom_call.1} parent=0
    _
  %s5 = ssub.s32 1, %s3
  %s6 = scalar_select 0, %s5, %s3
  $region1: #{tpu_custom_call.1} parent=0
    #allocation2 [shape = 'u8[512]{0}', space=smem, size = 0x200, scoped, tag = 'input window, operand 0, single buffered']
    #allocation3 [shape = 's32[2]{0}', space=sflag, size = 0x8, scoped, tag = 'scoped memory for tpu_custom_call.1']
    #allocation4 [shape = 's32[2]{0}', space=sflag, size = 0x8, scoped, tag = 'scoped memory for tpu_custom_call.1']
    #allocation5 [shape = 's32[2]{0}', space=sflag, size = 0x8, scoped, tag = 'scoped memory for tpu_custom_call.1']
    #allocation6 [shape = 'u8[24576]{0}', space=vmem, size = 0x6000, scoped, tag = 'input window, operand 1']
    #allocation7 [shape = 'u8[8192]{0}', space=vmem, size = 0x2000, scoped, tag = 'output window, operand 0']
    %7 = vsyncpa [#allocation5], 0
    %8 = vsyncpa [#allocation3], 0
    %s9 = scalar_lea.sflag [#allocation3], 1
    %10 = vsyncpa %s9, 0
    %11 = vsyncpa [#allocation4], 0
    %s12 = scalar_lea.sflag [#allocation4], 1
    %13 = vsyncpa %s12, 0
    loop: start=0, step=1, limit=6
    $region2: #{tpu_custom_call.1} parent=1 // loop_pre_header
      _
    $region3: #{tpu_custom_call.1} parent=1 // loop_header
      %s15 = sphi 0, %s19
      %p16 = scmp.ge.s32.totalorder %s15, 6
      %s23 = sphi 0, %s23
      %s25 = sphi 0, %s23
      %s26 = sphi 0, %s25
      %s40 = sphi 0, %s26
      %s46 = sphi 0, %s48
      %s49 = sphi 0, %s46
      %s50 = sphi 0, %s49
      %s66 = sphi 0, %s50
      %s72 = sphi 0, %s74
      %s75 = sphi 0, %s72
      %s76 = sphi 0, %s75
      %s92 = sphi 0, %s76
    $region4: #{tpu_custom_call.1} parent=1 // loop_header_branch
      %18 = sbr.rel (%p16) target = $region8
    $region5: #{tpu_custom_call.1} parent=1 // loop_body
      %s20 = ssub.s32 %s15, 1
      %s21 = ssub.s32 %s15, 2
      %s22 = sadd.s32 %s15, 1
      %s24 = sadd.s32 %s23, 1
      %p27 = scmp.eq.s32.totalorder %s15, 3
      %p28 = scmp.ne.s32.totalorder %s23, %s25
      %p29 = scmp.eq.s32.totalorder %s15, 0
      %p30 = por %p28, %p29
      %p31 = scmp.ne.s32.totalorder %s23, %s25
      %p32 = scmp.eq.s32.totalorder %s20, 3
      %p33 = por %p31, %p32
      %p34 = scmp.ne.s32.totalorder %s25, %s26
      %p35 = scmp.eq.s32.totalorder %s20, 0
      %p36 = por %p34, %p35
      %p37 = scmp.ne.s32.totalorder %s25, %s26
      %p38 = scmp.eq.s32.totalorder %s21, 3
      %p39 = por %p37, %p38
      %p41 = scmp.ne.s32.totalorder %s26, %s40
      %p42 = scmp.eq.s32.totalorder %s21, 0
      %p43 = por %p41, %p42
      %s44 = ssub.s32 %s15, %s22
      %p45 = scmp.eq.s32.totalorder %s44, 0
      %s47 = sadd.s32 %s46, 1
      %s48 = scalar_select %p45, %s46, %s47
      %p51 = pneg %p45
      %p52 = scmp.eq.s32.totalorder %s15, 3
      %p53 = por %p51, %p52
      %p54 = scmp.ne.s32.totalorder %s46, %s49
      %p55 = scmp.eq.s32.totalorder %s15, 0
      %p56 = por %p54, %p55
      %p57 = scmp.ne.s32.totalorder %s46, %s49
      %p58 = scmp.eq.s32.totalorder %s20, 3
      %p59 = por %p57, %p58
      %p60 = scmp.ne.s32.totalorder %s49, %s50
      %p61 = scmp.eq.s32.totalorder %s20, 0
      %p62 = por %p60, %p61
      %p63 = scmp.ne.s32.totalorder %s49, %s50
      %p64 = scmp.eq.s32.totalorder %s21, 3
      %p65 = por %p63, %p64
      %p67 = scmp.ne.s32.totalorder %s50, %s66
      %p68 = scmp.eq.s32.totalorder %s21, 0
      %p69 = por %p67, %p68
      %s70 = ssub.s32 %s15, %s22
      %p71 = scmp.eq.s32.totalorder %s70, 0
      %s73 = sadd.s32 %s72, 1
      %s74 = scalar_select %p71, %s72, %s73
      %p77 = pneg %p71
      %p78 = scmp.eq.s32.totalorder %s15, 3
      %p79 = por %p77, %p78
      %p80 = scmp.ne.s32.totalorder %s72, %s75
      %p81 = scmp.eq.s32.totalorder %s15, 0
      %p82 = por %p80, %p81
      %p83 = scmp.ne.s32.totalorder %s72, %s75
      %p84 = scmp.eq.s32.totalorder %s20, 3
      %p85 = por %p83, %p84
      %p86 = scmp.ne.s32.totalorder %s75, %s76
      %p87 = scmp.eq.s32.totalorder %s20, 0
      %p88 = por %p86, %p87
      %p89 = scmp.ne.s32.totalorder %s75, %s76
      %p90 = scmp.eq.s32.totalorder %s21, 3
      %p91 = por %p89, %p90
      %p93 = scmp.ne.s32.totalorder %s76, %s92
      %p94 = scmp.eq.s32.totalorder %s21, 0
      %p95 = por %p93, %p94
      %p96 = scmp.le.s32.totalorder 1, %s15
      %p97 = scmp.lt.s32.totalorder %s15, 5
      %p98 = pnand %p96, %p97
      %p99 = pneg %p98
      // Predicated region
      $region9: #{tpu_custom_call.1} parent=5 // pred_check
        _
      $region10: #{tpu_custom_call.1} parent=5 // pred_check_branch
        %101 = sbr.rel (%p98) target = $region12
      $region11: #{tpu_custom_call.1} parent=5 // pred_region
        %s102 = ssub.s32 %s15, 1
        // Predicated region
        $region13: #{tpu_custom_call.1} parent=11 // pred_check
          %p103 = pneg %p36
        $region14: #{tpu_custom_call.1} parent=11 // pred_check_branch
          %105 = sbr.rel (%p103) target = $region16
        $region15: #{tpu_custom_call.1} parent=11 // pred_region
          %s107 = ssub.s32 16, 16
          %108 = vsyncadd [#allocation5], %s107
          %111 = dma.hbm_to_smem %s0, 16, [#allocation2], [#allocation5]
        $region16: #{tpu_custom_call.1} parent=11 // pred_fallthru
          _
      $region12: #{tpu_custom_call.1} parent=5 // pred_fallthru
        _
      %p112 = scmp.lt.s32.totalorder %s15, 4
      // Predicated region
      $region17: #{tpu_custom_call.1} parent=5 // pred_check
        %p113 = pneg %p112
      $region18: #{tpu_custom_call.1} parent=5 // pred_check_branch
        %115 = sbr.rel (%p113) target = $region20
      $region19: #{tpu_custom_call.1} parent=5 // pred_region
        // Predicated region
        $region21: #{tpu_custom_call.1} parent=19 // pred_check
          %p116 = pneg %p56
        $region22: #{tpu_custom_call.1} parent=19 // pred_check_branch
          %118 = sbr.rel (%p116) target = $region24
        $region23: #{tpu_custom_call.1} parent=19 // pred_region
          %s119 = sand.u32 %s46, 1
          %s120 = scalar_lea.sflag [#allocation3], %s119
          %s121 = sand.u32 %s46, 1
          %s122 = smul.addr %s121, 24
          %s123 = scalar_lea.vmem [#allocation6], %s122
          %s125 = ssub.s32 384, 384
          %126 = vsyncadd %s120, %s125
          %s127 = smul.addr %s15, 128
          %s128 = scalar_lea.hbm %s1, %s127
          %s129 = sshll.u32 %s123, 4
          %s130 = int_to_ptr.vmem [resolvable:$true] %s129
          %135 = dma.hbm_to_vmem [thread:$0]  %s128, 384, %s130, %s120, 512, 128, 8
        $region24: #{tpu_custom_call.1} parent=19 // pred_fallthru
          _
      $region20: #{tpu_custom_call.1} parent=5 // pred_fallthru
        _
      %p136 = scmp.le.s32.totalorder 1, %s15
      %p137 = scmp.lt.s32.totalorder %s15, 5
      %p138 = pnand %p136, %p137
      %p139 = pneg %p138
      // Predicated region
      $region25: #{tpu_custom_call.1} parent=5 // pred_check
        _
      $region26: #{tpu_custom_call.1} parent=5 // pred_check_branch
        %141 = sbr.rel (%p138) target = $region28
      $region27: #{tpu_custom_call.1} parent=5 // pred_region
        %s142 = ssub.s32 %s15, 1
        // Predicated region
        $region29: #{tpu_custom_call.1} parent=27 // pred_check
          %p143 = pneg %p36
        $region30: #{tpu_custom_call.1} parent=27 // pred_check_branch
          %145 = sbr.rel (%p143) target = $region32
        $region31: #{tpu_custom_call.1} parent=27 // pred_region
          %146 = dma.done [#allocation5], 16
        $region32: #{tpu_custom_call.1} parent=27 // pred_fallthru
          _
        %s147 = sand.u32 %s49, 1
        %s148 = scalar_lea.sflag [#allocation3], %s147
        %s149 = sand.u32 %s49, 1
        %s150 = smul.addr %s149, 24
        %s151 = scalar_lea.vmem [#allocation6], %s150
        // Predicated region
        $region33: #{tpu_custom_call.1} parent=27 // pred_check
          %p152 = pneg %p62
        $region34: #{tpu_custom_call.1} parent=27 // pred_check_branch
          %154 = sbr.rel (%p152) target = $region36
        $region35: #{tpu_custom_call.1} parent=27 // pred_region
          %155 = dma.done %s148, 384
        $region36: #{tpu_custom_call.1} parent=27 // pred_fallthru
          _
        %156 = sfence
        %p157 = pneg %p36
        %p158 = pneg %p33
        %s159 = sand.u32 %s49, 1
        %s160 = scalar_lea.sflag [#allocation3], %s159
        %s161 = sand.u32 %s49, 1
        %s162 = smul.addr %s161, 24
        %s163 = scalar_lea.vmem [#allocation6], %s162
        %p164 = pneg %p62
        %p165 = pneg %p59
        %p166 = pneg %p88
        %p167 = pneg %p85
        %s168 = sand.u32 %s75, 1
        %s169 = scalar_lea.sflag [#allocation4], %s168
        %s170 = sand.u32 %s75, 1
        %s171 = smul.addr %s170, 8
        %s172 = scalar_lea.vmem [#allocation7], %s171
        %v173 = vld [vmem:[%s151] sm:$0xff]
        %s174 = scalar_lea.vmem %s151, 8 [#allocation6]
        %v175 = vld [vmem:[%s174] sm:$0xff]
        %s176 = scalar_lea.vmem %s151, 16 [#allocation6]
        %v177 = vld [vmem:[%s176] sm:$0xff]
        %s178 = sld [smem:[#allocation2]]
        %v179 = vstv %s178
        %v180 = vmul.f32 %v173, %v179
        %s181 = sld [smem:[#allocation2 + $0x8]]
        %v182 = vstv %s181
        %v183 = vmul.f32 %v175, %v182
        %v184 = vadd.f32 %v180, %v183
        %s185 = sld [smem:[#allocation2 + $0x10]]
        %v186 = vstv %s185
        %v187 = vmul.f32 %v177, %v186
        %v188 = vadd.f32 %v184, %v187
        %s189 = sld [smem:[#allocation2 + $0x18]]
        %v190 = vstv %s189
        %v191 = vadd.f32 %v188, %v190
        %v192 = vmax.f32 %v191, 0.0
        %s193 = sld [smem:[#allocation2 + $0x1]]
        %v194 = vstv %s193
        %v195 = vmul.f32 %v173, %v194
        %s196 = sld [smem:[#allocation2 + $0x9]]
        %v197 = vstv %s196
        %v198 = vmul.f32 %v175, %v197
        %v199 = vadd.f32 %v195, %v198
        %s200 = sld [smem:[#allocation2 + $0x11]]
        %v201 = vstv %s200
        %v202 = vmul.f32 %v177, %v201
        %v203 = vadd.f32 %v199, %v202
        %s204 = sld [smem:[#allocation2 + $0x19]]
        %v205 = vstv %s204
        %v206 = vadd.f32 %v203, %v205
        %v207 = vmax.f32 %v206, 0.0
        %s208 = sld [smem:[#allocation2 + $0x2]]
        %v209 = vstv %s208
        %v210 = vmul.f32 %v173, %v209
        %s211 = sld [smem:[#allocation2 + $0xa]]
        %v212 = vstv %s211
        %v213 = vmul.f32 %v175, %v212
        %v214 = vadd.f32 %v210, %v213
        %s215 = sld [smem:[#allocation2 + $0x12]]
        %v216 = vstv %s215
        %v217 = vmul.f32 %v177, %v216
        %v218 = vadd.f32 %v214, %v217
        %s219 = sld [smem:[#allocation2 + $0x1a]]
        %v220 = vstv %s219
        %v221 = vadd.f32 %v218, %v220
        %v222 = vmax.f32 %v221, 0.0
        %s223 = sld [smem:[#allocation2 + $0x3]]
        %v224 = vstv %s223
        %v225 = vmul.f32 %v173, %v224
        %s226 = sld [smem:[#allocation2 + $0xb]]
        %v227 = vstv %s226
        %v228 = vmul.f32 %v175, %v227
        %v229 = vadd.f32 %v225, %v228
        %s230 = sld [smem:[#allocation2 + $0x13]]
        %v231 = vstv %s230
        %v232 = vmul.f32 %v177, %v231
        %v233 = vadd.f32 %v229, %v232
        %s234 = sld [smem:[#allocation2 + $0x1b]]
        %v235 = vstv %s234
        %v236 = vadd.f32 %v233, %v235
        %v237 = vmax.f32 %v236, 0.0
        %s238 = sld [smem:[#allocation2 + $0x4]]
        %v239 = vstv %s238
        %v240 = vmul.f32 %v173, %v239
        %s241 = sld [smem:[#allocation2 + $0xc]]
        %v242 = vstv %s241
        %v243 = vmul.f32 %v175, %v242
        %v244 = vadd.f32 %v240, %v243
        %s245 = sld [smem:[#allocation2 + $0x14]]
        %v246 = vstv %s245
        %v247 = vmul.f32 %v177, %v246
        %v248 = vadd.f32 %v244, %v247
        %s249 = sld [smem:[#allocation2 + $0x1c]]
        %v250 = vstv %s249
        %v251 = vadd.f32 %v248, %v250
        %v252 = vmax.f32 %v251, 0.0
        %s253 = sld [smem:[#allocation2 + $0x5]]
        %v254 = vstv %s253
        %v255 = vmul.f32 %v173, %v254
        %s256 = sld [smem:[#allocation2 + $0xd]]
        %v257 = vstv %s256
        %v258 = vmul.f32 %v175, %v257
        %v259 = vadd.f32 %v255, %v258
        %s260 = sld [smem:[#allocation2 + $0x15]]
        %v261 = vstv %s260
        %v262 = vmul.f32 %v177, %v261
        %v263 = vadd.f32 %v259, %v262
        %s264 = sld [smem:[#allocation2 + $0x1d]]
        %v265 = vstv %s264
        %v266 = vadd.f32 %v263, %v265
        %v267 = vmax.f32 %v266, 0.0
        %s268 = sld [smem:[#allocation2 + $0x6]]
        %v269 = vstv %s268
        %v270 = vmul.f32 %v173, %v269
        %s271 = sld [smem:[#allocation2 + $0xe]]
        %v272 = vstv %s271
        %v273 = vmul.f32 %v175, %v272
        %v274 = vadd.f32 %v270, %v273
        %s275 = sld [smem:[#allocation2 + $0x16]]
        %v276 = vstv %s275
        %v277 = vmul.f32 %v177, %v276
        %v278 = vadd.f32 %v274, %v277
        %s279 = sld [smem:[#allocation2 + $0x1e]]
        %v280 = vstv %s279
        %v281 = vadd.f32 %v278, %v280
        %v282 = vmax.f32 %v281, 0.0
        %s283 = sld [smem:[#allocation2 + $0x7]]
        %v284 = vstv %s283
        %v285 = vmul.f32 %v173, %v284
        %s286 = sld [smem:[#allocation2 + $0xf]]
        %v287 = vstv %s286
        %v288 = vmul.f32 %v175, %v287
        %v289 = vadd.f32 %v285, %v288
        %s290 = sld [smem:[#allocation2 + $0x17]]
        %v291 = vstv %s290
        %v292 = vmul.f32 %v177, %v291
        %v293 = vadd.f32 %v289, %v292
        %s294 = sld [smem:[#allocation2 + $0x1f]]
        %v295 = vstv %s294
        %v296 = vadd.f32 %v293, %v295
        %v297 = vmax.f32 %v296, 0.0
        %s298 = sld [smem:[#allocation2 + $0x20]]
        %v299 = vstv %s298
        %v300 = vmul.f32 %v192, %v299
        %s301 = sld [smem:[#allocation2 + $0x28]]
        %v302 = vstv %s301
        %v303 = vmul.f32 %v207, %v302
        %v304 = vadd.f32 %v300, %v303
        %s305 = sld [smem:[#allocation2 + $0x30]]
        %v306 = vstv %s305
        %v307 = vmul.f32 %v222, %v306
        %v308 = vadd.f32 %v304, %v307
        %s309 = sld [smem:[#allocation2 + $0x38]]
        %v310 = vstv %s309
        %v311 = vmul.f32 %v237, %v310
        %v312 = vadd.f32 %v308, %v311
        %s313 = sld [smem:[#allocation2 + $0x40]]
        %v314 = vstv %s313
        %v315 = vmul.f32 %v252, %v314
        %v316 = vadd.f32 %v312, %v315
        %s317 = sld [smem:[#allocation2 + $0x48]]
        %v318 = vstv %s317
        %v319 = vmul.f32 %v267, %v318
        %v320 = vadd.f32 %v316, %v319
        %s321 = sld [smem:[#allocation2 + $0x50]]
        %v322 = vstv %s321
        %v323 = vmul.f32 %v282, %v322
        %v324 = vadd.f32 %v320, %v323
        %s325 = sld [smem:[#allocation2 + $0x58]]
        %v326 = vstv %s325
        %v327 = vmul.f32 %v297, %v326
        %v328 = vadd.f32 %v324, %v327
        %s329 = sld [smem:[#allocation2 + $0x60]]
        %v330 = vstv %s329
        %v331 = vadd.f32 %v328, %v330
        %v332 = vmax.f32 %v331, 0.0
        %s333 = sld [smem:[#allocation2 + $0x21]]
        %v334 = vstv %s333
        %v335 = vmul.f32 %v192, %v334
        %s336 = sld [smem:[#allocation2 + $0x29]]
        %v337 = vstv %s336
        %v338 = vmul.f32 %v207, %v337
        %v339 = vadd.f32 %v335, %v338
        %s340 = sld [smem:[#allocation2 + $0x31]]
        %v341 = vstv %s340
        %v342 = vmul.f32 %v222, %v341
        %v343 = vadd.f32 %v339, %v342
        %s344 = sld [smem:[#allocation2 + $0x39]]
        %v345 = vstv %s344
        %v346 = vmul.f32 %v237, %v345
        %v347 = vadd.f32 %v343, %v346
        %s348 = sld [smem:[#allocation2 + $0x41]]
        %v349 = vstv %s348
        %v350 = vmul.f32 %v252, %v349
        %v351 = vadd.f32 %v347, %v350
        %s352 = sld [smem:[#allocation2 + $0x49]]
        %v353 = vstv %s352
        %v354 = vmul.f32 %v267, %v353
        %v355 = vadd.f32 %v351, %v354
        %s356 = sld [smem:[#allocation2 + $0x51]]
        %v357 = vstv %s356
        %v358 = vmul.f32 %v282, %v357
        %v359 = vadd.f32 %v355, %v358
        %s360 = sld [smem:[#allocation2 + $0x59]]
        %v361 = vstv %s360
        %v362 = vmul.f32 %v297, %v361
        %v363 = vadd.f32 %v359, %v362
        %s364 = sld [smem:[#allocation2 + $0x61]]
        %v365 = vstv %s364
        %v366 = vadd.f32 %v363, %v365
        %v367 = vmax.f32 %v366, 0.0
        %s368 = sld [smem:[#allocation2 + $0x22]]
        %v369 = vstv %s368
        %v370 = vmul.f32 %v192, %v369
        %s371 = sld [smem:[#allocation2 + $0x2a]]
        %v372 = vstv %s371
        %v373 = vmul.f32 %v207, %v372
        %v374 = vadd.f32 %v370, %v373
        %s375 = sld [smem:[#allocation2 + $0x32]]
        %v376 = vstv %s375
        %v377 = vmul.f32 %v222, %v376
        %v378 = vadd.f32 %v374, %v377
        %s379 = sld [smem:[#allocation2 + $0x3a]]
        %v380 = vstv %s379
        %v381 = vmul.f32 %v237, %v380
        %v382 = vadd.f32 %v378, %v381
        %s383 = sld [smem:[#allocation2 + $0x42]]
        %v384 = vstv %s383
        %v385 = vmul.f32 %v252, %v384
        %v386 = vadd.f32 %v382, %v385
        %s387 = sld [smem:[#allocation2 + $0x4a]]
        %v388 = vstv %s387
        %v389 = vmul.f32 %v267, %v388
        %v390 = vadd.f32 %v386, %v389
        %s391 = sld [smem:[#allocation2 + $0x52]]
        %v392 = vstv %s391
        %v393 = vmul.f32 %v282, %v392
        %v394 = vadd.f32 %v390, %v393
        %s395 = sld [smem:[#allocation2 + $0x5a]]
        %v396 = vstv %s395
        %v397 = vmul.f32 %v297, %v396
        %v398 = vadd.f32 %v394, %v397
        %s399 = sld [smem:[#allocation2 + $0x62]]
        %v400 = vstv %s399
        %v401 = vadd.f32 %v398, %v400
        %v402 = vmax.f32 %v401, 0.0
        %s403 = sld [smem:[#allocation2 + $0x23]]
        %v404 = vstv %s403
        %v405 = vmul.f32 %v192, %v404
        %s406 = sld [smem:[#allocation2 + $0x2b]]
        %v407 = vstv %s406
        %v408 = vmul.f32 %v207, %v407
        %v409 = vadd.f32 %v405, %v408
        %s410 = sld [smem:[#allocation2 + $0x33]]
        %v411 = vstv %s410
        %v412 = vmul.f32 %v222, %v411
        %v413 = vadd.f32 %v409, %v412
        %s414 = sld [smem:[#allocation2 + $0x3b]]
        %v415 = vstv %s414
        %v416 = vmul.f32 %v237, %v415
        %v417 = vadd.f32 %v413, %v416
        %s418 = sld [smem:[#allocation2 + $0x43]]
        %v419 = vstv %s418
        %v420 = vmul.f32 %v252, %v419
        %v421 = vadd.f32 %v417, %v420
        %s422 = sld [smem:[#allocation2 + $0x4b]]
        %v423 = vstv %s422
        %v424 = vmul.f32 %v267, %v423
        %v425 = vadd.f32 %v421, %v424
        %s426 = sld [smem:[#allocation2 + $0x53]]
        %v427 = vstv %s426
        %v428 = vmul.f32 %v282, %v427
        %v429 = vadd.f32 %v425, %v428
        %s430 = sld [smem:[#allocation2 + $0x5b]]
        %v431 = vstv %s430
        %v432 = vmul.f32 %v297, %v431
        %v433 = vadd.f32 %v429, %v432
        %s434 = sld [smem:[#allocation2 + $0x63]]
        %v435 = vstv %s434
        %v436 = vadd.f32 %v433, %v435
        %v437 = vmax.f32 %v436, 0.0
        %s438 = sld [smem:[#allocation2 + $0x24]]
        %v439 = vstv %s438
        %v440 = vmul.f32 %v192, %v439
        %s441 = sld [smem:[#allocation2 + $0x2c]]
        %v442 = vstv %s441
        %v443 = vmul.f32 %v207, %v442
        %v444 = vadd.f32 %v440, %v443
        %s445 = sld [smem:[#allocation2 + $0x34]]
        %v446 = vstv %s445
        %v447 = vmul.f32 %v222, %v446
        %v448 = vadd.f32 %v444, %v447
        %s449 = sld [smem:[#allocation2 + $0x3c]]
        %v450 = vstv %s449
        %v451 = vmul.f32 %v237, %v450
        %v452 = vadd.f32 %v448, %v451
        %s453 = sld [smem:[#allocation2 + $0x44]]
        %v454 = vstv %s453
        %v455 = vmul.f32 %v252, %v454
        %v456 = vadd.f32 %v452, %v455
        %s457 = sld [smem:[#allocation2 + $0x4c]]
        %v458 = vstv %s457
        %v459 = vmul.f32 %v267, %v458
        %v460 = vadd.f32 %v456, %v459
        %s461 = sld [smem:[#allocation2 + $0x54]]
        %v462 = vstv %s461
        %v463 = vmul.f32 %v282, %v462
        %v464 = vadd.f32 %v460, %v463
        %s465 = sld [smem:[#allocation2 + $0x5c]]
        %v466 = vstv %s465
        %v467 = vmul.f32 %v297, %v466
        %v468 = vadd.f32 %v464, %v467
        %s469 = sld [smem:[#allocation2 + $0x64]]
        %v470 = vstv %s469
        %v471 = vadd.f32 %v468, %v470
        %v472 = vmax.f32 %v471, 0.0
        %s473 = sld [smem:[#allocation2 + $0x25]]
        %v474 = vstv %s473
        %v475 = vmul.f32 %v192, %v474
        %s476 = sld [smem:[#allocation2 + $0x2d]]
        %v477 = vstv %s476
        %v478 = vmul.f32 %v207, %v477
        %v479 = vadd.f32 %v475, %v478
        %s480 = sld [smem:[#allocation2 + $0x35]]
        %v481 = vstv %s480
        %v482 = vmul.f32 %v222, %v481
        %v483 = vadd.f32 %v479, %v482
        %s484 = sld [smem:[#allocation2 + $0x3d]]
        %v485 = vstv %s484
        %v486 = vmul.f32 %v237, %v485
        %v487 = vadd.f32 %v483, %v486
        %s488 = sld [smem:[#allocation2 + $0x45]]
        %v489 = vstv %s488
        %v490 = vmul.f32 %v252, %v489
        %v491 = vadd.f32 %v487, %v490
        %s492 = sld [smem:[#allocation2 + $0x4d]]
        %v493 = vstv %s492
        %v494 = vmul.f32 %v267, %v493
        %v495 = vadd.f32 %v491, %v494
        %s496 = sld [smem:[#allocation2 + $0x55]]
        %v497 = vstv %s496
        %v498 = vmul.f32 %v282, %v497
        %v499 = vadd.f32 %v495, %v498
        %s500 = sld [smem:[#allocation2 + $0x5d]]
        %v501 = vstv %s500
        %v502 = vmul.f32 %v297, %v501
        %v503 = vadd.f32 %v499, %v502
        %s504 = sld [smem:[#allocation2 + $0x65]]
        %v505 = vstv %s504
        %v506 = vadd.f32 %v503, %v505
        %v507 = vmax.f32 %v506, 0.0
        %s508 = sld [smem:[#allocation2 + $0x26]]
        %v509 = vstv %s508
        %v510 = vmul.f32 %v192, %v509
        %s511 = sld [smem:[#allocation2 + $0x2e]]
        %v512 = vstv %s511
        %v513 = vmul.f32 %v207, %v512
        %v514 = vadd.f32 %v510, %v513
        %s515 = sld [smem:[#allocation2 + $0x36]]
        %v516 = vstv %s515
        %v517 = vmul.f32 %v222, %v516
        %v518 = vadd.f32 %v514, %v517
        %s519 = sld [smem:[#allocation2 + $0x3e]]
        %v520 = vstv %s519
        %v521 = vmul.f32 %v237, %v520
        %v522 = vadd.f32 %v518, %v521
        %s523 = sld [smem:[#allocation2 + $0x46]]
        %v524 = vstv %s523
        %v525 = vmul.f32 %v252, %v524
        %v526 = vadd.f32 %v522, %v525
        %s527 = sld [smem:[#allocation2 + $0x4e]]
        %v528 = vstv %s527
        %v529 = vmul.f32 %v267, %v528
        %v530 = vadd.f32 %v526, %v529
        %s531 = sld [smem:[#allocation2 + $0x56]]
        %v532 = vstv %s531
        %v533 = vmul.f32 %v282, %v532
        %v534 = vadd.f32 %v530, %v533
        %s535 = sld [smem:[#allocation2 + $0x5e]]
        %v536 = vstv %s535
        %v537 = vmul.f32 %v297, %v536
        %v538 = vadd.f32 %v534, %v537
        %s539 = sld [smem:[#allocation2 + $0x66]]
        %v540 = vstv %s539
        %v541 = vadd.f32 %v538, %v540
        %v542 = vmax.f32 %v541, 0.0
        %s543 = sld [smem:[#allocation2 + $0x27]]
        %v544 = vstv %s543
        %v545 = vmul.f32 %v192, %v544
        %s546 = sld [smem:[#allocation2 + $0x2f]]
        %v547 = vstv %s546
        %v548 = vmul.f32 %v207, %v547
        %v549 = vadd.f32 %v545, %v548
        %s550 = sld [smem:[#allocation2 + $0x37]]
        %v551 = vstv %s550
        %v552 = vmul.f32 %v222, %v551
        %v553 = vadd.f32 %v549, %v552
        %s554 = sld [smem:[#allocation2 + $0x3f]]
        %v555 = vstv %s554
        %v556 = vmul.f32 %v237, %v555
        %v557 = vadd.f32 %v553, %v556
        %s558 = sld [smem:[#allocation2 + $0x47]]
        %v559 = vstv %s558
        %v560 = vmul.f32 %v252, %v559
        %v561 = vadd.f32 %v557, %v560
        %s562 = sld [smem:[#allocation2 + $0x4f]]
        %v563 = vstv %s562
        %v564 = vmul.f32 %v267, %v563
        %v565 = vadd.f32 %v561, %v564
        %s566 = sld [smem:[#allocation2 + $0x57]]
        %v567 = vstv %s566
        %v568 = vmul.f32 %v282, %v567
        %v569 = vadd.f32 %v565, %v568
        %s570 = sld [smem:[#allocation2 + $0x5f]]
        %v571 = vstv %s570
        %v572 = vmul.f32 %v297, %v571
        %v573 = vadd.f32 %v569, %v572
        %s574 = sld [smem:[#allocation2 + $0x67]]
        %v575 = vstv %s574
        %v576 = vadd.f32 %v573, %v575
        %v577 = vmax.f32 %v576, 0.0
        %s578 = sld [smem:[#allocation2 + $0x68]]
        %v579 = vstv %s578
        %v580 = vmul.f32 %v332, %v579
        %s581 = sld [smem:[#allocation2 + $0x69]]
        %v582 = vstv %s581
        %v583 = vmul.f32 %v367, %v582
        %v584 = vadd.f32 %v580, %v583
        %s585 = sld [smem:[#allocation2 + $0x6a]]
        %v586 = vstv %s585
        %v587 = vmul.f32 %v402, %v586
        %v588 = vadd.f32 %v584, %v587
        %s589 = sld [smem:[#allocation2 + $0x6b]]
        %v590 = vstv %s589
        %v591 = vmul.f32 %v437, %v590
        %v592 = vadd.f32 %v588, %v591
        %s593 = sld [smem:[#allocation2 + $0x6c]]
        %v594 = vstv %s593
        %v595 = vmul.f32 %v472, %v594
        %v596 = vadd.f32 %v592, %v595
        %s597 = sld [smem:[#allocation2 + $0x6d]]
        %v598 = vstv %s597
        %v599 = vmul.f32 %v507, %v598
        %v600 = vadd.f32 %v596, %v599
        %s601 = sld [smem:[#allocation2 + $0x6e]]
        %v602 = vstv %s601
        %v603 = vmul.f32 %v542, %v602
        %v604 = vadd.f32 %v600, %v603
        %s605 = sld [smem:[#allocation2 + $0x6f]]
        %v606 = vstv %s605
        %v607 = vmul.f32 %v577, %v606
        %v608 = vadd.f32 %v604, %v607
        %s609 = sld [smem:[#allocation2 + $0x70]]
        %v610 = vstv %s609
        %v611 = vadd.f32 %v608, %v610
        %612 = vst [vmem:[%s172] sm:$0xff] %v611
        %s613 = sand.u32 %s75, 1
        %s614 = scalar_lea.sflag [#allocation4], %s613
        %s615 = sand.u32 %s75, 1
        %s616 = smul.addr %s615, 8
        %s617 = scalar_lea.vmem [#allocation7], %s616
        // Predicated region
        $region37: #{tpu_custom_call.1} parent=27 // pred_check
          %p618 = pneg %p85
        $region38: #{tpu_custom_call.1} parent=27 // pred_check_branch
          %620 = sbr.rel (%p618) target = $region40
        $region39: #{tpu_custom_call.1} parent=27 // pred_region
          %s622 = ssub.s32 128, 128
          %623 = vsyncadd %s614, %s622
          %s624 = smul.addr %s20, 128
          %s625 = scalar_lea.hbm %s2, %s624
          %s627 = sshll.u32 %s617, 4
          %s628 = int_to_ptr.vmem [resolvable:$true] %s627
          %630 = dma.vmem_to_hbm [thread:$0]  %s628, 128, %s625, %s614
        $region40: #{tpu_custom_call.1} parent=27 // pred_fallthru
          _
      $region28: #{tpu_custom_call.1} parent=5 // pred_fallthru
        _
      %p631 = scmp.le.s32.totalorder 2, %s15
      // Predicated region
      $region41: #{tpu_custom_call.1} parent=5 // pred_check
        %p632 = pneg %p631
      $region42: #{tpu_custom_call.1} parent=5 // pred_check_branch
        %634 = sbr.rel (%p632) target = $region44
      $region43: #{tpu_custom_call.1} parent=5 // pred_region
        %s635 = ssub.s32 %s15, 2
        // Predicated region
        $region45: #{tpu_custom_call.1} parent=43 // pred_check
          %p636 = pneg %p91
        $region46: #{tpu_custom_call.1} parent=43 // pred_check_branch
          %638 = sbr.rel (%p636) target = $region48
        $region47: #{tpu_custom_call.1} parent=43 // pred_region
          %s639 = sand.u32 %s76, 1
          %s640 = scalar_lea.sflag [#allocation4], %s639
          %s641 = sand.u32 %s76, 1
          %s642 = smul.addr %s641, 8
          %s643 = scalar_lea.vmem [#allocation7], %s642
          %644 = dma.done %s640, 128
        $region48: #{tpu_custom_call.1} parent=43 // pred_fallthru
          _
      $region44: #{tpu_custom_call.1} parent=5 // pred_fallthru
        _
    $region6: #{tpu_custom_call.1} parent=1 // loop_footer
      %s19 = sadd.s32 1, %s15
    $region7: #{tpu_custom_call.1} parent=1 // loop_footer_branch
      %14 = sbr.rel target = $region3
    $region8: #{tpu_custom_call.1} parent=1 // loop_exit
      _
    %645 = vsyncpa [#allocation3], 1
    %s646 = scalar_lea.sflag [#allocation3], 1
    %647 = vsyncpa %s646, 1
    %648 = vsyncpa [#allocation4], 1
    %s649 = scalar_lea.sflag [#allocation4], 1
    %650 = vsyncpa %s649, 1
    %651 = vsyncpa [#allocation5], 1
    %s652 = scalar_lea.sflag [#allocation5], 1
    %653 = vsyncpa %s652, 1

</llo_original>
